<compile_context>
chip_gen: v7x
topology: tpu7x:2x2x1
jax: 0.10.0
libtpu: 0.0.40
codegen_flags: <defaults>
</compile_context>

<pallas_src>
import jax
import jax.numpy as jnp
from jax.experimental import pallas as pl
from jax.experimental.pallas import tpu as pltpu


def _round_up(x, m):
    return (x + m - 1) // m * m


def _cdiv(a, b):
    return (a + b - 1) // b


def _default_vmem_limit_bytes():
    """~75% of this chip's physical VMEM (auto-fits v5e/v6e 128MiB, v7x 64MiB)."""
    cap = None
    try:
        cap = getattr(pltpu.get_tpu_info(), "vmem_capacity_bytes", None)
    except Exception:
        cap = None
    if not cap:
        cap = 64 * 1024 * 1024  # conservative fallback (v7x-sized)
    return int(0.75 * cap)


def _make_mlp_kernel(V, tk, ragged_v):
    def kernel(x_ref, w1_ref, b1_ref, w2_ref, b2_ref, o_ref, acc_ref):
        k = pl.program_id(1)

        @pl.when(k == 0)
        def _zero_acc():
            acc_ref[...] = jnp.zeros_like(acc_ref)

        lhs = x_ref[...]
        w1 = w1_ref[...]
        if ragged_v:
            # Final K tile is partial: OOB block bytes are unspecified (can be
            # NaN) and NaN*0 = NaN, so mask BOTH operands to zero.  This branch
            # is only traced when V % tk != 0.
            valid = V - k * tk
            col = jax.lax.broadcasted_iota(jnp.int32, lhs.shape, 1)
            lhs = jnp.where(col < valid, lhs, jnp.zeros_like(lhs))
            row = jax.lax.broadcasted_iota(jnp.int32, w1.shape, 0)
            w1 = jnp.where(row < valid, w1, jnp.zeros_like(w1))
        if lhs.dtype != w1.dtype:
            # Deliberate mixed precision: run the MXU pass in the (narrower)
            # weight dtype; accumulation stays f32 via preferred_element_type.
            lhs = lhs.astype(w1.dtype)
        acc_ref[...] += jnp.dot(lhs, w1, preferred_element_type=jnp.float32)

        @pl.when(k == pl.num_programs(1) - 1)
        def _finalize():
            h = jnp.maximum(acc_ref[...] + b1_ref[...].astype(jnp.float32), 0.0)
            o = jnp.dot(h.astype(w2_ref.dtype), w2_ref[...],
                        preferred_element_type=jnp.float32)
            o_ref[...] = (o + b2_ref[...].astype(jnp.float32)).astype(o_ref.dtype)

    return kernel


def fmri_encoder_forward(x, w1, b1, w2, b2, *, tm=None, tk=None,
                         vmem_limit_bytes=None):
    """Fused MLP encoder forward: ReLU(x @ w1 + b1) @ w2 + b2.

    Streams w1 in (tk, H) tiles over a (batch, K-reduction) grid with a VMEM
    f32 accumulator.  V is NOT padded: the ragged last K tile is masked in the
    kernel.  Batch is tiled adaptively; D is lane-padded via the small w2/b2.
    """
    B, V = x.shape
    H = w1.shape[1]
    D = w2.shape[1]
    assert w1.shape == (V, H) and b1.shape == (1, H)
    assert w2.shape == (H, D) and b2.shape == (1, D)

    x_bytes = jnp.dtype(x.dtype).itemsize
    w_bytes = jnp.dtype(w1.dtype).itemsize
    o_bytes = x_bytes
    sublane = max(8, 32 // x_bytes)  # (8,128) f32 / (16,128) bf16 / (32,128) 1B

    if vmem_limit_bytes is None:
        vmem_limit_bytes = _default_vmem_limit_bytes()

    # ---- batch tiling: adaptive tm, minimal padding, multiple tiles for big B.
    if tm is None:
        bp_min = _round_up(B, sublane)
        n_bt = _cdiv(bp_min, 256)                       # cap tiles at 256 rows
        tm = _round_up(_cdiv(bp_min, n_bt), sublane)
    else:
        assert tm % sublane == 0, f"tm must be a multiple of {sublane} for {x.dtype}"
        n_bt = _cdiv(B, tm)
    Bp = n_bt * tm
    if Bp != B:
        x = jnp.pad(x, ((0, Bp - B), (0, 0)))           # < one tile of extra rows

    # ---- output lane density: pad only the tiny w2/b2 along D to 128 multiple.
    Dp = D if D % 128 == 0 else _round_up(D, 128)
    if Dp != D:
        w2 = jnp.pad(w2, ((0, 0), (0, Dp - D)))
        b2 = jnp.pad(b2, ((0, 0), (0, Dp - D)))

    # ---- K tiling: VMEM-budget-driven tk; x / w1 are NOT padded along V. ----
    if V <= 128:
        tk = V                                          # single exact block
    else:
        v_cap = (V // 128) * 128                        # keep block <= array extent
        if tk is None:
            budget = int(0.70 * vmem_limit_bytes)       # headroom for compiler scratch
            fixed = (2 * H * Dp * w_bytes               # resident (double-buffered) w2
                     + 2 * (H + Dp) * w_bytes           # b1, b2
                     + tm * H * 4                       # f32 accumulator
                     + 2 * tm * Dp * o_bytes)           # output tile
            per_k = 2 * (tm * x_bytes + H * w_bytes)    # double-buffered x & w1 per tk
            assert budget > fixed + 128 * per_k, (
                "hidden dim too large for resident w2 + accumulator; "
                "TODO(synk): tile the second matmul over H for very large H")
            tk = (budget - fixed) // per_k
            tk = max(128, min(16384, (tk // 128) * 128))
        else:
            assert tk % 128 == 0, "tk must be a multiple of 128"
        tk = min(tk, v_cap)
    n_kt = _cdiv(V, tk)
    ragged_v = (V % tk) != 0

    kernel = _make_mlp_kernel(V, tk, ragged_v)

    out = pl.pallas_call(
        kernel,
        out_shape=jax.ShapeDtypeStruct((Bp, Dp), x.dtype),
        grid_spec=pltpu.PrefetchScalarGridSpec(
            num_scalar_prefetch=0,
            grid=(n_bt, n_kt),                                 # reduction axis last
            in_specs=[
                pl.BlockSpec((tm, tk), lambda i, k: (i, k)),   # x tile
                pl.BlockSpec((tk, H), lambda i, k: (k, 0)),    # streamed w1 tile
                pl.BlockSpec((1, H), lambda i, k: (0, 0)),     # b1 (resident)
                pl.BlockSpec((H, Dp), lambda i, k: (0, 0)),    # w2 (resident)
                pl.BlockSpec((1, Dp), lambda i, k: (0, 0)),    # b2 (resident)
            ],
            out_specs=pl.BlockSpec((tm, Dp), lambda i, k: (i, 0)),
            scratch_shapes=[pltpu.VMEM((tm, H), jnp.float32)],  # h accumulator
        ),
        compiler_params=pltpu.CompilerParams(
            dimension_semantics=("parallel", "arbitrary"),
            vmem_limit_bytes=vmem_limit_bytes,
        ),
    )(x, w1, b1, w2, b2)

    if Bp != B or Dp != D:
        out = out[:B, :D]
    return out


def _reference_forward(x, w1, b1, w2, b2):
    lhs = x.astype(w1.dtype) if x.dtype != w1.dtype else x
    h = jnp.dot(lhs, w1, preferred_element_type=jnp.float32)
    h = jnp.maximum(h + b1.astype(jnp.float32), 0.0)
    o = jnp.dot(h.astype(w2.dtype), w2, preferred_element_type=jnp.float32)
    return (o + b2.astype(jnp.float32)).astype(x.dtype)


if __name__ == "__main__":
    # Small demo shapes: batch=8 fMRI voxel vectors of length 1024,
    # hidden=128, latent=128.
    B, V, H, D = 8, 1024, 128, 128

    key = jax.random.PRNGKey(0)
    kx, k1, k2, k3, k4 = jax.random.split(key, 5)

    x = jax.random.normal(kx, (B, V), dtype=jnp.float32)
    w1 = jax.random.normal(k1, (V, H), dtype=jnp.float32) * (1.0 / jnp.sqrt(V))
    b1 = jax.random.normal(k2, (1, H), dtype=jnp.float32) * 0.01
    w2 = jax.random.normal(k3, (H, D), dtype=jnp.float32) * (1.0 / jnp.sqrt(H))
    b2 = jax.random.normal(k4, (1, D), dtype=jnp.float32) * 0.01

    # 1) f32 path, forced multi-step K reduction (tk=256 -> 4 K steps),
    #    adaptive tm = 8 (no 16x batch padding anymore).
    out = jax.block_until_ready(fmri_encoder_forward(x, w1, b1, w2, b2, tk=256))
    ref = _reference_forward(x, w1, b1, w2, b2)
    assert out.shape == (B, D)
    assert jnp.allclose(out, ref, atol=1e-4, rtol=1e-4), "f32 mismatch vs reference"

    # 2) bf16 weight streaming (halves W1 HBM traffic), f32 MXU accumulation.
    w1b, b1b = w1.astype(jnp.bfloat16), b1.astype(jnp.bfloat16)
    w2b, b2b = w2.astype(jnp.bfloat16), b2.astype(jnp.bfloat16)
    out_bf = jax.block_until_ready(
        fmri_encoder_forward(x, w1b, b1b, w2b, b2b, tk=256))
    ref_bf = _reference_forward(x, w1b, b1b, w2b, b2b)
    assert out_bf.shape == (B, D)
    assert jnp.allclose(out_bf, ref_bf, atol=5e-2, rtol=5e-2), "bf16 mismatch"

    # 3) fully auto plan (tk auto-sized from VMEM budget, K collapses to 1 here).
    out_auto = jax.block_until_ready(fmri_encoder_forward(x, w1, b1, w2, b2))
    assert jnp.allclose(out_auto, ref, atol=1e-4, rtol=1e-4), "auto-plan mismatch"

    # 4) ragged case: B=200 (single 200-row tile, no padding) and V=1000
    #    (not a multiple of 128) -> exercises the in-kernel last-K-tile mask
    #    with no wrapper-side padding of x or w1 along V.
    B2, V2 = 200, 1000
    x2 = jax.random.normal(kx, (B2, V2), dtype=jnp.float32)
    w1r = jax.random.normal(k1, (V2, H), dtype=jnp.float32) * (1.0 / jnp.sqrt(V2))
    out2 = jax.block_until_ready(fmri_encoder_forward(x2, w1r, b1, w2, b2))
    ref2 = _reference_forward(x2, w1r, b1, w2, b2)
    assert out2.shape == (B2, D)
    assert jnp.allclose(out2, ref2, atol=1e-4, rtol=1e-4), "ragged-V mismatch"

    print("KERNEL_OK")
</pallas_src>

<mosaic_0001>
module attributes {stable_mosaic.version = 11 : i64} {
  func.func @kernel(%arg0: i32, %arg1: i32, %arg2: memref<8x256xf32, #tpu.memory_space<vmem>>, %arg3: memref<256x128xf32, #tpu.memory_space<vmem>>, %arg4: memref<1x128xf32, #tpu.memory_space<vmem>>, %arg5: memref<128x128xf32, #tpu.memory_space<vmem>>, %arg6: memref<1x128xf32, #tpu.memory_space<vmem>>, %arg7: memref<8x128xf32, #tpu.memory_space<vmem>>, %arg8: memref<8x128xf32, #tpu.memory_space<vmem>>) attributes {dimension_semantics = [#tpu.dimension_semantics<parallel>, #tpu.dimension_semantics<arbitrary>], iteration_bounds = array<i64: 1, 4>, scalar_prefetch = 0 : i64, scratch_operands = 1 : i64, tpu.core_type = #tpu.core_type<tc>, window_params = [{transform_indices = @transform_0, window_bounds = array<i64: 8, 256>}, {transform_indices = @transform_1, window_bounds = array<i64: 256, 128>}, {pipeline_mode = #tpu.pipeline_mode<synchronous>, transform_indices = @transform_2, window_bounds = array<i64: 1, 128>}, {pipeline_mode = #tpu.pipeline_mode<synchronous>, transform_indices = @transform_3, window_bounds = array<i64: 128, 128>}, {pipeline_mode = #tpu.pipeline_mode<synchronous>, transform_indices = @transform_4, window_bounds = array<i64: 1, 128>}, {transform_indices = @transform_5, window_bounds = array<i64: 8, 128>}]} {
    %c0_i32 = arith.constant 0 : i32
    %0 = arith.cmpi eq, %arg1, %c0_i32 : i32
    %1 = arith.extui %0 : i1 to i32
    %c0_i32_0 = arith.constant 0 : i32
    %2 = arith.cmpi ne, %1, %c0_i32_0 : i32
    scf.if %2 {
      %cst_9 = arith.constant 0.000000e+00 : f32
      %12 = vector.broadcast %cst_9 : f32 to vector<8x128xf32>
      %c0_10 = arith.constant 0 : index
      %c0_11 = arith.constant 0 : index
      %13 = vector.load %arg8[%c0_10, %c0_11] : memref<8x128xf32, #tpu.memory_space<vmem>>, vector<8x128xf32>
      tpu.vector_store %arg8[%c0_10, %c0_11], %12 {strides = array<i32>} : memref<8x128xf32, #tpu.memory_space<vmem>>, vector<8x128xf32>,
    } else {
    }
    %c0 = arith.constant 0 : index
    %c0_1 = arith.constant 0 : index
    %3 = vector.load %arg2[%c0, %c0_1] : memref<8x256xf32, #tpu.memory_space<vmem>>, vector<8x256xf32>
    %c0_2 = arith.constant 0 : index
    %c0_3 = arith.constant 0 : index
    %4 = vector.load %arg3[%c0_2, %c0_3] : memref<256x128xf32, #tpu.memory_space<vmem>>, vector<256x128xf32>
    %c0_4 = arith.constant 0 : index
    %c0_5 = arith.constant 0 : index
    %5 = vector.load %arg8[%c0_4, %c0_5] : memref<8x128xf32, #tpu.memory_space<vmem>>, vector<8x128xf32>
    %cst = arith.constant dense<0.000000e+00> : vector<8x128xf32>
    %6 = tpu.matmul %3, %4, %cst {dimension_numbers = #tpu.dot_dimension_numbers<[1], [0], [0], [1], [0, 0, 1, 1], [], []>} : vector<8x256xf32>, vector<256x128xf32>, vector<8x128xf32> -> vector<8x128xf32>
    %7 = arith.addf %5, %6 : vector<8x128xf32>
    %c0_6 = arith.constant 0 : index
    %c0_7 = arith.constant 0 : index
    %8 = vector.load %arg8[%c0_6, %c0_7] : memref<8x128xf32, #tpu.memory_space<vmem>>, vector<8x128xf32>
    tpu.vector_store %arg8[%c0_6, %c0_7], %7 {strides = array<i32>} : memref<8x128xf32, #tpu.memory_space<vmem>>, vector<8x128xf32>,
    %c3_i32 = arith.constant 3 : i32
    %9 = arith.cmpi eq, %arg1, %c3_i32 : i32
    %10 = arith.extui %9 : i1 to i32
    %c0_i32_8 = arith.constant 0 : i32
    %11 = arith.cmpi ne, %10, %c0_i32_8 : i32
    scf.if %11 {
      %c0_9 = arith.constant 0 : index
      %c0_10 = arith.constant 0 : index
      %12 = vector.load %arg8[%c0_9, %c0_10] : memref<8x128xf32, #tpu.memory_space<vmem>>, vector<8x128xf32>
      %c0_11 = arith.constant 0 : index
      %c0_12 = arith.constant 0 : index
      %13 = vector.load %arg4[%c0_11, %c0_12] : memref<1x128xf32, #tpu.memory_space<vmem>>, vector<1x128xf32>
      %14 = vector.broadcast %13 : vector<1x128xf32> to vector<8x128xf32>
      %15 = arith.addf %12, %14 : vector<8x128xf32>
      %cst_13 = arith.constant 0.000000e+00 : f32
      %16 = vector.broadcast %cst_13 : f32 to vector<8x128xf32>
      %17 = arith.maximumf %15, %16 : vector<8x128xf32>
      %c0_14 = arith.constant 0 : index
      %c0_15 = arith.constant 0 : index
      %18 = vector.load %arg5[%c0_14, %c0_15] : memref<128x128xf32, #tpu.memory_space<vmem>>, vector<128x128xf32>
      %cst_16 = arith.constant dense<0.000000e+00> : vector<8x128xf32>
      %19 = tpu.matmul %17, %18, %cst_16 {dimension_numbers = #tpu.dot_dimension_numbers<[1], [0], [0], [1], [0, 0, 1, 1], [], []>} : vector<8x128xf32>, vector<128x128xf32>, vector<8x128xf32> -> vector<8x128xf32>
      %c0_17 = arith.constant 0 : index
      %c0_18 = arith.constant 0 : index
      %20 = vector.load %arg6[%c0_17, %c0_18] : memref<1x128xf32, #tpu.memory_space<vmem>>, vector<1x128xf32>
      %21 = vector.broadcast %20 : vector<1x128xf32> to vector<8x128xf32>
      %22 = arith.addf %19, %21 : vector<8x128xf32>
      %c0_19 = arith.constant 0 : index
      %c0_20 = arith.constant 0 : index
      %23 = vector.load %arg7[%c0_19, %c0_20] : memref<8x128xf32, #tpu.memory_space<vmem>>, vector<8x128xf32>
      tpu.vector_store %arg7[%c0_19, %c0_20], %22 {strides = array<i32>} : memref<8x128xf32, #tpu.memory_space<vmem>>, vector<8x128xf32>,
    } else {
    }
    return
  }
  func.func @transform_0(%arg0: i32, %arg1: i32) -> (i32, i32) {
    %c0_i32 = arith.constant 0 : i32
    return %arg0, %arg1 : i32, i32
  }
  func.func @transform_1(%arg0: i32, %arg1: i32) -> (i32, i32) {
    %c0_i32 = arith.constant 0 : i32
    %c0_i32_0 = arith.constant 0 : i32
    return %arg1, %c0_i32 : i32, i32
  }
  func.func @transform_2(%arg0: i32, %arg1: i32) -> (i32, i32) {
    %c0_i32 = arith.constant 0 : i32
    %c0_i32_0 = arith.constant 0 : i32
    %c0_i32_1 = arith.constant 0 : i32
    return %c0_i32, %c0_i32_0 : i32, i32
  }
  func.func @transform_3(%arg0: i32, %arg1: i32) -> (i32, i32) {
    %c0_i32 = arith.constant 0 : i32
    %c0_i32_0 = arith.constant 0 : i32
    %c0_i32_1 = arith.constant 0 : i32
    return %c0_i32, %c0_i32_0 : i32, i32
  }
  func.func @transform_4(%arg0: i32, %arg1: i32) -> (i32, i32) {
    %c0_i32 = arith.constant 0 : i32
    %c0_i32_0 = arith.constant 0 : i32
    %c0_i32_1 = arith.constant 0 : i32
    return %c0_i32, %c0_i32_0 : i32, i32
  }
  func.func @transform_5(%arg0: i32, %arg1: i32) -> (i32, i32) {
    %c0_i32 = arith.constant 0 : i32
    %c0_i32_0 = arith.constant 0 : i32
    return %arg0, %c0_i32 : i32, i32
  }
}

</mosaic_0001>

<llo_original>
// kernel: tpu_custom_call.1
$region0: #{tpu_custom_call.1}
  #allocation0 [shape = 'u32[]', space=smem, size = 0x4, offset = 0x4, fixed_abs, tag = 'smem constant byte address 0x4 - core index']
  #allocation1 [shape = 'u32[144,128]{1,0:T(1,128)}', space=vmem, size = 0x12000, scoped, tag = 'internal scratch']
  #allocation2 [shape = 'f32[8,128]{1,0:T(8,128)}', space=vmem, size = 0x1000, scoped, tag = 'scratch operand']
  %s0 = inlined_call_operand.hbm [shape: f32[8,1024], index: 0, kind: input, shape index: {}]
  %s1 = inlined_call_operand.hbm [shape: f32[1024,128], index: 1, kind: input, shape index: {}]
  %s2 = inlined_call_operand.vmem [shape: f32[1,128], index: 2, kind: input, shape index: {}]
  %s3 = inlined_call_operand.hbm [shape: f32[128,128], index: 3, kind: input, shape index: {}]
  %s4 = inlined_call_operand.vmem [shape: f32[1,128], index: 4, kind: input, shape index: {}]
  %s5 = inlined_call_operand.hbm [shape: f32[8,128], index: 5, kind: output, shape index: {}]
  %s6 = sld [smem:[#allocation0]]
  $region73: #{tpu_custom_call.1} parent=0
    _
  %s8 = ssub.s32 1, %s6
  %s9 = scalar_select 0, %s8, %s6
  $region1: #{tpu_custom_call.1} parent=0
    #allocation3 [shape = 'u8[16384]{0}', space=vmem, size = 0x4000, scoped, tag = 'input window, operand 0']
    #allocation4 [shape = 's32[2]{0}', space=sflag, size = 0x8, scoped, tag = 'scoped memory for tpu_custom_call.1']
    #allocation5 [shape = 's32[2]{0}', space=sflag, size = 0x8, scoped, tag = 'scoped memory for tpu_custom_call.1']
    #allocation6 [shape = 'u8[262144]{0}', space=vmem, size = 0x40000, scoped, tag = 'input window, operand 1']
    #allocation7 [shape = 's32[2]{0}', space=sflag, size = 0x8, scoped, tag = 'scoped memory for tpu_custom_call.1']
    #allocation8 [shape = 'u8[65536]{0}', space=vmem, size = 0x10000, scoped, tag = 'input window, operand 3, single buffered']
    #allocation9 [shape = 'u8[4096]{0}', space=vmem, size = 0x1000, scoped, tag = 'output window, operand 0, single buffered']
    %10 = vsyncpa [#allocation4], 0
    %s11 = scalar_lea.sflag [#allocation4], 1
    %12 = vsyncpa %s11, 0
    %13 = vsyncpa [#allocation7], 0
    %s14 = scalar_lea.sflag [#allocation7], 1
    %15 = vsyncpa %s14, 0
    %16 = vsyncpa [#allocation5], 0
    loop: start=0, step=1, limit=6
    $region2: #{tpu_custom_call.1} parent=1 // loop_pre_header
      _
    $region3: #{tpu_custom_call.1} parent=1 // loop_header
      %s18 = sphi 0, %s22
      %p19 = scmp.ge.s32.totalorder %s18, 6
      %s25 = sphi 0, %s37
      %s26 = sphi 0, %s33
      %s27 = sphi 0, %s25
      %s28 = sphi 0, %s26
      %s29 = sphi 0, %s27
      %s30 = sphi 0, %s28
      %s42 = sphi 0, %s44
      %s45 = sphi 0, %s42
      %s46 = sphi 0, %s45
      %s62 = sphi 0, %s46
      %s68 = sphi 0, %s70
      %s71 = sphi 0, %s68
      %s72 = sphi 0, %s71
      %s88 = sphi 0, %s72
      %s92 = sphi 0, %s92
      %s94 = sphi 0, %s92
      %s95 = sphi 0, %s94
      %s109 = sphi 0, %s95
      %s113 = sphi 0, %s113
      %s115 = sphi 0, %s113
      %s116 = sphi 0, %s115
      %s130 = sphi 0, %s116
      %s134 = sphi 0, %s134
      %s136 = sphi 0, %s134
      %s137 = sphi 0, %s136
      %s151 = sphi 0, %s137
      %s157 = sphi 0, %s159
      %s160 = sphi 0, %s157
      %s161 = sphi 0, %s160
      %s177 = sphi 0, %s161
    $region4: #{tpu_custom_call.1} parent=1 // loop_header_branch
      %21 = sbr.rel (%p19) target = $region8
    $region5: #{tpu_custom_call.1} parent=1 // loop_body
      %s23 = ssub.s32 %s18, 1
      %s24 = ssub.s32 %s18, 2
      %s31 = sadd.s32 1, %s26
      %p32 = scmp.ge.s32.totalorder %s31, 4
      %s33 = scalar_select %p32, 0, %s31
      %s34 = sadd.s32 1, %s25
      %s35 = scalar_select %p32, %s34, %s25
      %p36 = scmp.ge.s32.totalorder %s35, 1
      %s37 = scalar_select %p36, 0, %s35
      %s38 = ssub.s32 %s25, %s37
      %s39 = ssub.s32 %s26, %s33
      %s40 = sor.u32 %s38, %s39
      %p41 = scmp.eq.s32.totalorder %s40, 0
      %s43 = sadd.s32 %s42, 1
      %s44 = scalar_select %p41, %s42, %s43
      %p47 = pneg %p41
      %p48 = scmp.eq.s32.totalorder %s18, 3
      %p49 = por %p47, %p48
      %p50 = scmp.ne.s32.totalorder %s42, %s45
      %p51 = scmp.eq.s32.totalorder %s18, 0
      %p52 = por %p50, %p51
      %p53 = scmp.ne.s32.totalorder %s42, %s45
      %p54 = scmp.eq.s32.totalorder %s23, 3
      %p55 = por %p53, %p54
      %p56 = scmp.ne.s32.totalorder %s45, %s46
      %p57 = scmp.eq.s32.totalorder %s23, 0
      %p58 = por %p56, %p57
      %p59 = scmp.ne.s32.totalorder %s45, %s46
      %p60 = scmp.eq.s32.totalorder %s24, 3
      %p61 = por %p59, %p60
      %p63 = scmp.ne.s32.totalorder %s46, %s62
      %p64 = scmp.eq.s32.totalorder %s24, 0
      %p65 = por %p63, %p64
      %s66 = ssub.s32 %s26, %s33
      %p67 = scmp.eq.s32.totalorder %s66, 0
      %s69 = sadd.s32 %s68, 1
      %s70 = scalar_select %p67, %s68, %s69
      %p73 = pneg %p67
      %p74 = scmp.eq.s32.totalorder %s18, 3
      %p75 = por %p73, %p74
      %p76 = scmp.ne.s32.totalorder %s68, %s71
      %p77 = scmp.eq.s32.totalorder %s18, 0
      %p78 = por %p76, %p77
      %p79 = scmp.ne.s32.totalorder %s68, %s71
      %p80 = scmp.eq.s32.totalorder %s23, 3
      %p81 = por %p79, %p80
      %p82 = scmp.ne.s32.totalorder %s71, %s72
      %p83 = scmp.eq.s32.totalorder %s23, 0
      %p84 = por %p82, %p83
      %p85 = scmp.ne.s32.totalorder %s71, %s72
      %p86 = scmp.eq.s32.totalorder %s24, 3
      %p87 = por %p85, %p86
      %p89 = scmp.ne.s32.totalorder %s72, %s88
      %p90 = scmp.eq.s32.totalorder %s24, 0
      %p91 = por %p89, %p90
      %s93 = sadd.s32 %s92, 1
      %p96 = scmp.eq.s32.totalorder %s18, 3
      %p97 = scmp.ne.s32.totalorder %s92, %s94
      %p98 = scmp.eq.s32.totalorder %s18, 0
      %p99 = por %p97, %p98
      %p100 = scmp.ne.s32.totalorder %s92, %s94
      %p101 = scmp.eq.s32.totalorder %s23, 3
      %p102 = por %p100, %p101
      %p103 = scmp.ne.s32.totalorder %s94, %s95
      %p104 = scmp.eq.s32.totalorder %s23, 0
      %p105 = por %p103, %p104
      %p106 = scmp.ne.s32.totalorder %s94, %s95
      %p107 = scmp.eq.s32.totalorder %s24, 3
      %p108 = por %p106, %p107
      %p110 = scmp.ne.s32.totalorder %s95, %s109
      %p111 = scmp.eq.s32.totalorder %s24, 0
      %p112 = por %p110, %p111
      %s114 = sadd.s32 %s113, 1
      %p117 = scmp.eq.s32.totalorder %s18, 3
      %p118 = scmp.ne.s32.totalorder %s113, %s115
      %p119 = scmp.eq.s32.totalorder %s18, 0
      %p120 = por %p118, %p119
      %p121 = scmp.ne.s32.totalorder %s113, %s115
      %p122 = scmp.eq.s32.totalorder %s23, 3
      %p123 = por %p121, %p122
      %p124 = scmp.ne.s32.totalorder %s115, %s116
      %p125 = scmp.eq.s32.totalorder %s23, 0
      %p126 = por %p124, %p125
      %p127 = scmp.ne.s32.totalorder %s115, %s116
      %p128 = scmp.eq.s32.totalorder %s24, 3
      %p129 = por %p127, %p128
      %p131 = scmp.ne.s32.totalorder %s116, %s130
      %p132 = scmp.eq.s32.totalorder %s24, 0
      %p133 = por %p131, %p132
      %s135 = sadd.s32 %s134, 1
      %p138 = scmp.eq.s32.totalorder %s18, 3
      %p139 = scmp.ne.s32.totalorder %s134, %s136
      %p140 = scmp.eq.s32.totalorder %s18, 0
      %p141 = por %p139, %p140
      %p142 = scmp.ne.s32.totalorder %s134, %s136
      %p143 = scmp.eq.s32.totalorder %s23, 3
      %p144 = por %p142, %p143
      %p145 = scmp.ne.s32.totalorder %s136, %s137
      %p146 = scmp.eq.s32.totalorder %s23, 0
      %p147 = por %p145, %p146
      %p148 = scmp.ne.s32.totalorder %s136, %s137
      %p149 = scmp.eq.s32.totalorder %s24, 3
      %p150 = por %p148, %p149
      %p152 = scmp.ne.s32.totalorder %s137, %s151
      %p153 = scmp.eq.s32.totalorder %s24, 0
      %p154 = por %p152, %p153
      %s155 = ssub.s32 %s25, %s37
      %p156 = scmp.eq.s32.totalorder %s155, 0
      %s158 = sadd.s32 %s157, 1
      %s159 = scalar_select %p156, %s157, %s158
      %p162 = pneg %p156
      %p163 = scmp.eq.s32.totalorder %s18, 3
      %p164 = por %p162, %p163
      %p165 = scmp.ne.s32.totalorder %s157, %s160
      %p166 = scmp.eq.s32.totalorder %s18, 0
      %p167 = por %p165, %p166
      %p168 = scmp.ne.s32.totalorder %s157, %s160
      %p169 = scmp.eq.s32.totalorder %s23, 3
      %p170 = por %p168, %p169
      %p171 = scmp.ne.s32.totalorder %s160, %s161
      %p172 = scmp.eq.s32.totalorder %s23, 0
      %p173 = por %p171, %p172
      %p174 = scmp.ne.s32.totalorder %s160, %s161
      %p175 = scmp.eq.s32.totalorder %s24, 3
      %p176 = por %p174, %p175
      %p178 = scmp.ne.s32.totalorder %s161, %s177
      %p179 = scmp.eq.s32.totalorder %s24, 0
      %p180 = por %p178, %p179
      %p181 = scmp.le.s32.totalorder 1, %s18
      %p182 = scmp.lt.s32.totalorder %s18, 5
      %p183 = pnand %p181, %p182
      %p184 = pneg %p183
      // Predicated region
      $region9: #{tpu_custom_call.1} parent=5 // pred_check
        _
      $region10: #{tpu_custom_call.1} parent=5 // pred_check_branch
        %186 = sbr.rel (%p183) target = $region12
      $region11: #{tpu_custom_call.1} parent=5 // pred_region
        %s187 = ssub.s32 %s18, 1
        // Predicated region
        $region13: #{tpu_custom_call.1} parent=11 // pred_check
          %p188 = pneg %p105
        $region14: #{tpu_custom_call.1} parent=11 // pred_check_branch
          %190 = sbr.rel (%p188) target = $region16
        $region15: #{tpu_custom_call.1} parent=11 // pred_region
          _
        $region16: #{tpu_custom_call.1} parent=11 // pred_fallthru
          _
        // Predicated region
        $region17: #{tpu_custom_call.1} parent=11 // pred_check
          %p191 = pneg %p126
        $region18: #{tpu_custom_call.1} parent=11 // pred_check_branch
          %193 = sbr.rel (%p191) target = $region20
        $region19: #{tpu_custom_call.1} parent=11 // pred_region
          %s195 = ssub.s32 2048, 2048
          %196 = vsyncadd [#allocation7], %s195
          %s197 = sshll.u32 [#allocation8], 4
          %s198 = int_to_ptr.vmem [resolvable:$true] %s197
          %203 = dma.hbm_to_vmem [thread:$0]  %s3, 2048, %s198, [#allocation7], 128, 128, 8
        $region20: #{tpu_custom_call.1} parent=11 // pred_fallthru
          _
        // Predicated region
        $region21: #{tpu_custom_call.1} parent=11 // pred_check
          %p204 = pneg %p147
        $region22: #{tpu_custom_call.1} parent=11 // pred_check_branch
          %206 = sbr.rel (%p204) target = $region24
        $region23: #{tpu_custom_call.1} parent=11 // pred_region
          _
        $region24: #{tpu_custom_call.1} parent=11 // pred_fallthru
          _
      $region12: #{tpu_custom_call.1} parent=5 // pred_fallthru
        _
      %p207 = scmp.lt.s32.totalorder %s18, 4
      // Predicated region
      $region25: #{tpu_custom_call.1} parent=5 // pred_check
        %p208 = pneg %p207
      $region26: #{tpu_custom_call.1} parent=5 // pred_check_branch
        %210 = sbr.rel (%p208) target = $region28
      $region27: #{tpu_custom_call.1} parent=5 // pred_region
        // Predicated region
        $region29: #{tpu_custom_call.1} parent=27 // pred_check
          %p211 = pneg %p52
        $region30: #{tpu_custom_call.1} parent=27 // pred_check_branch
          %213 = sbr.rel (%p211) target = $region32
        $region31: #{tpu_custom_call.1} parent=27 // pred_region
          %s214 = sand.u32 %s42, 1
          %s215 = scalar_lea.sflag [#allocation4], %s214
          %s216 = sand.u32 %s42, 1
          %s217 = smul.addr %s216, 16
          %s218 = scalar_lea.vmem [#allocation3], %s217
          %s219 = smul.u32 2, %s26
          %s221 = ssub.s32 256, 256
          %222 = vsyncadd %s215, %s221
          %s223 = smul.addr %s25, 8
          %s224 = sadd.s32 %s219, %s223
          %s225 = smul.addr %s224, 128
          %s226 = scalar_lea.hbm %s0, %s225
          %s228 = sshll.u32 %s218, 4
          %s229 = int_to_ptr.vmem [resolvable:$true] %s228
          %231 = dma.hbm_to_vmem [thread:$0]  %s226, 256, %s229, %s215
        $region32: #{tpu_custom_call.1} parent=27 // pred_fallthru
          _
        // Predicated region
        $region33: #{tpu_custom_call.1} parent=27 // pred_check
          %p232 = pneg %p78
        $region34: #{tpu_custom_call.1} parent=27 // pred_check_branch
          %234 = sbr.rel (%p232) target = $region36
        $region35: #{tpu_custom_call.1} parent=27 // pred_region
          %s235 = sand.u32 %s18, 1
          %s236 = scalar_lea.sflag [#allocation7], %s235
          %s237 = sand.u32 %s68, 1
          %s238 = smul.addr %s237, 256
          %s239 = scalar_lea.vmem [#allocation6], %s238
          %s240 = smul.u32 32, %s26
          %s242 = ssub.s32 4096, 4096
          %243 = vsyncadd %s236, %s242
          %s244 = smul.addr %s240, 128
          %s245 = scalar_lea.hbm %s1, %s244
          %s246 = sshll.u32 %s239, 4
          %s247 = int_to_ptr.vmem [resolvable:$true] %s246
          %252 = dma.hbm_to_vmem [thread:$0]  %s245, 4096, %s247, %s236, 128, 128, 8
        $region36: #{tpu_custom_call.1} parent=27 // pred_fallthru
          _
      $region28: #{tpu_custom_call.1} parent=5 // pred_fallthru
        _
      %p253 = scmp.le.s32.totalorder 1, %s18
      %p254 = scmp.lt.s32.totalorder %s18, 5
      %p255 = pnand %p253, %p254
      %p256 = pneg %p255
      // Predicated region
      $region37: #{tpu_custom_call.1} parent=5 // pred_check
        _
      $region38: #{tpu_custom_call.1} parent=5 // pred_check_branch
        %258 = sbr.rel (%p255) target = $region40
      $region39: #{tpu_custom_call.1} parent=5 // pred_region
        %s259 = ssub.s32 %s18, 1
        %s260 = sand.u32 %s45, 1
        %s261 = scalar_lea.sflag [#allocation4], %s260
        %s262 = sand.u32 %s45, 1
        %s263 = smul.addr %s262, 16
        %s264 = scalar_lea.vmem [#allocation3], %s263
        // Predicated region
        $region41: #{tpu_custom_call.1} parent=39 // pred_check
          %p265 = pneg %p58
        $region42: #{tpu_custom_call.1} parent=39 // pred_check_branch
          %267 = sbr.rel (%p265) target = $region44
        $region43: #{tpu_custom_call.1} parent=39 // pred_region
          %268 = dma.done %s261, 256
        $region44: #{tpu_custom_call.1} parent=39 // pred_fallthru
          _
        %s269 = sand.u32 %s23, 1
        %s270 = scalar_lea.sflag [#allocation7], %s269
        %s271 = sand.u32 %s71, 1
        %s272 = smul.addr %s271, 256
        %s273 = scalar_lea.vmem [#allocation6], %s272
        // Predicated region
        $region45: #{tpu_custom_call.1} parent=39 // pred_check
          %p274 = pneg %p84
        $region46: #{tpu_custom_call.1} parent=39 // pred_check_branch
          %276 = sbr.rel (%p274) target = $region48
        $region47: #{tpu_custom_call.1} parent=39 // pred_region
          %277 = dma.done %s270, 4096
        $region48: #{tpu_custom_call.1} parent=39 // pred_fallthru
          _
        // Predicated region
        $region49: #{tpu_custom_call.1} parent=39 // pred_check
          %p278 = pneg %p126
        $region50: #{tpu_custom_call.1} parent=39 // pred_check_branch
          %280 = sbr.rel (%p278) target = $region52
        $region51: #{tpu_custom_call.1} parent=39 // pred_region
          %281 = dma.done [#allocation7], 2048
        $region52: #{tpu_custom_call.1} parent=39 // pred_fallthru
          _
        %s282 = sand.u32 %s45, 1
        %s283 = scalar_lea.sflag [#allocation4], %s282
        %s284 = sand.u32 %s45, 1
        %s285 = smul.addr %s284, 16
        %s286 = scalar_lea.vmem [#allocation3], %s285
        %p287 = pneg %p58
        %p288 = pneg %p55
        %s289 = sand.u32 %s23, 1
        %s290 = scalar_lea.sflag [#allocation7], %s289
        %s291 = sand.u32 %s71, 1
        %s292 = smul.addr %s291, 256
        %s293 = scalar_lea.vmem [#allocation6], %s292
        %p294 = pneg %p84
        %p295 = pneg %p81
        %p296 = pneg %p105
        %p297 = pneg %p102
        %p298 = pneg %p126
        %p299 = pneg %p123
        %p300 = pneg %p147
        %p301 = pneg %p144
        %p302 = pneg %p173
        %p303 = pneg %p170
        %s304 = smul.u32 2, %s28
        %s305 = smul.u32 32, %s28
        %p306 = scmp.eq.s32.totalorder %s28, 0
        // Predicated region
        $region53: #{tpu_custom_call.1} parent=39 // pred_check
          %p307 = pneg %p306
        $region54: #{tpu_custom_call.1} parent=39 // pred_check_branch
          %309 = sbr.rel (%p307) target = $region56
        $region55: #{tpu_custom_call.1} parent=39 // pred_region
          %310 = vst [vmem:[#allocation2] sm:$0xff] 0.0
        $region56: #{tpu_custom_call.1} parent=39 // pred_fallthru
          _
        %v311 = vld [vmem:[%s264] sm:$0xff]
        %v312 = vld [vmem:[%s264 + $0x8] sm:$0xff]
        %v313 = vld [vmem:[%s273] sm:$0xff]
        %v314 = vld [vmem:[%s273 + $0x8] sm:$0xff]
        %v315 = vld [vmem:[%s273 + $0x10] sm:$0xff]
        %v316 = vld [vmem:[%s273 + $0x18] sm:$0xff]
        %v317 = vld [vmem:[%s273 + $0x20] sm:$0xff]
        %v318 = vld [vmem:[%s273 + $0x28] sm:$0xff]
        %v319 = vld [vmem:[%s273 + $0x30] sm:$0xff]
        %v320 = vld [vmem:[%s273 + $0x38] sm:$0xff]
        %v321 = vld [vmem:[%s273 + $0x40] sm:$0xff]
        %v322 = vld [vmem:[%s273 + $0x48] sm:$0xff]
        %v323 = vld [vmem:[%s273 + $0x50] sm:$0xff]
        %v324 = vld [vmem:[%s273 + $0x58] sm:$0xff]
        %v325 = vld [vmem:[%s273 + $0x60] sm:$0xff]
        %v326 = vld [vmem:[%s273 + $0x68] sm:$0xff]
        %v327 = vld [vmem:[%s273 + $0x70] sm:$0xff]
        %v328 = vld [vmem:[%s273 + $0x78] sm:$0xff]
        %v329 = vld [vmem:[%s273 + $0x80] sm:$0xff]
        %v330 = vld [vmem:[%s273 + $0x88] sm:$0xff]
        %v331 = vld [vmem:[%s273 + $0x90] sm:$0xff]
        %v332 = vld [vmem:[%s273 + $0x98] sm:$0xff]
        %v333 = vld [vmem:[%s273 + $0xa0] sm:$0xff]
        %v334 = vld [vmem:[%s273 + $0xa8] sm:$0xff]
        %v335 = vld [vmem:[%s273 + $0xb0] sm:$0xff]
        %v336 = vld [vmem:[%s273 + $0xb8] sm:$0xff]
        %v337 = vld [vmem:[%s273 + $0xc0] sm:$0xff]
        %v338 = vld [vmem:[%s273 + $0xc8] sm:$0xff]
        %v339 = vld [vmem:[%s273 + $0xd0] sm:$0xff]
        %v340 = vld [vmem:[%s273 + $0xd8] sm:$0xff]
        %v341 = vld [vmem:[%s273 + $0xe0] sm:$0xff]
        %v342 = vld [vmem:[%s273 + $0xe8] sm:$0xff]
        %v343 = vld [vmem:[%s273 + $0xf0] sm:$0xff]
        %v344 = vld [vmem:[%s273 + $0xf8] sm:$0xff]
        %v345 = vld [vmem:[#allocation2] sm:$0xff]
        %346 = vmatprep.subr.mxu0 0.0
        %347 = vmatpush1.msra.mxu0 %v313
        %348 = vmatprep.subr.mxu0 0.0
        %349 = vmatpush1.msra.mxu0 %v314
        %350 = vmatprep.subr.mxu0 0.0
        %351 = vmatpush1.msra.mxu0 %v315
        %352 = vmatprep.subr.mxu0 0.0
        %353 = vmatpush1.msra.mxu0 %v316
        %354 = vmatprep.subr.mxu0 0.0
        %355 = vmatpush1.msra.mxu0 %v317
        %356 = vmatprep.subr.mxu0 0.0
        %357 = vmatpush1.msra.mxu0 %v318
        %358 = vmatprep.subr.mxu0 0.0
        %359 = vmatpush1.msra.mxu0 %v319
        %360 = vmatprep.subr.mxu0 0.0
        %361 = vmatpush1.msra.mxu0 %v320
        %362 = vmatprep.subr.mxu0 0.0
        %363 = vmatpush1.msra.mxu0 %v321
        %364 = vmatprep.subr.mxu0 0.0
        %365 = vmatpush1.msra.mxu0 %v322
        %366 = vmatprep.subr.mxu0 0.0
        %367 = vmatpush1.msra.mxu0 %v323
        %368 = vmatprep.subr.mxu0 0.0
        %369 = vmatpush1.msra.mxu0 %v324
        %370 = vmatprep.subr.mxu0 0.0
        %371 = vmatpush1.msra.mxu0 %v325
        %372 = vmatprep.subr.mxu0 0.0
        %373 = vmatpush1.msra.mxu0 %v326
        %374 = vmatprep.subr.mxu0 0.0
        %375 = vmatpush1.msra.mxu0 %v327
        %376 = vmatprep.subr.mxu0 0.0
        %377 = vmatpush1.msra.mxu0 %v328
        %378 = vmatprep.subr.mxu0 0.0
        %379 = vmatpush1.msra.mxu0 %v329
        %380 = vmatprep.subr.mxu0 0.0
        %381 = vmatpush1.msra.mxu0 %v330
        %382 = vmatprep.subr.mxu0 0.0
        %383 = vmatpush1.msra.mxu0 %v331
        %384 = vmatprep.subr.mxu0 0.0
        %385 = vmatpush1.msra.mxu0 %v332
        %386 = vmatprep.subr.mxu0 0.0
        %387 = vmatpush1.msra.mxu0 %v333
        %388 = vmatprep.subr.mxu0 0.0
        %389 = vmatpush1.msra.mxu0 %v334
        %390 = vmatprep.subr.mxu0 0.0
        %391 = vmatpush1.msra.mxu0 %v335
        %392 = vmatprep.subr.mxu0 0.0
        %393 = vmatpush1.msra.mxu0 %v336
        %394 = vmatprep.subr.mxu0 0.0
        %395 = vmatpush1.msra.mxu0 %v337
        %396 = vmatprep.subr.mxu0 0.0
        %397 = vmatpush1.msra.mxu0 %v338
        %398 = vmatprep.subr.mxu0 0.0
        %399 = vmatpush1.msra.mxu0 %v339
        %400 = vmatprep.subr.mxu0 0.0
        %401 = vmatpush1.msra.mxu0 %v340
        %402 = vmatprep.subr.mxu0 0.0
        %403 = vmatpush1.msra.mxu0 %v341
        %404 = vmatprep.subr.mxu0 0.0
        %405 = vmatpush1.msra.mxu0 %v342
        %406 = vmatprep.subr.mxu0 0.0
        %407 = vmatpush1.msra.mxu0 %v343
        %408 = vmatprep.subr.mxu0 0.0
        %409 = vmatpush1.msra.mxu0 %v344
        %410 = vmatprep.mubr.f32.mxu0 %v312
        %411 = vmatmul.mubr.f32.gmra.mrb[0].mxu0 %v311
        %v412 = vpop.f32.mrb[0].mxu0
        %v413 = vadd.f32 0.0, %v412
        %v414 = vpop.f32.mrb[0].mxu0
        %415 = vdwg.mxu0
        %v416 = vadd.f32 %v345, %v413
        %417 = vst [vmem:[#allocation2] sm:$0xff] %v416
        %p418 = scmp.eq.s32.totalorder %s28, 3
        // Predicated region
        $region57: #{tpu_custom_call.1} parent=39 // pred_check
          %p419 = pneg %p418
        $region58: #{tpu_custom_call.1} parent=39 // pred_check_branch
          %421 = sbr.rel (%p419) target = $region60
        $region59: #{tpu_custom_call.1} parent=39 // pred_region
          %v422 = vld [vmem:[#allocation2] sm:$0xff]
          %v423 = vld [vmem:[%s2] sm:$0x1]
          %v425 = vlaneseq
          %v426 = vshrl.u32 %v425, 7
          %v427 = vsub.s32 0, %v426
          %v428 = vrot.slane %v423, %v427
          %v430 = vadd.f32 %v422, %v428
          %v431 = vmax.f32 %v430, 0.0
          %v432 = vld [vmem:[#allocation8] sm:$0xff]
          %v433 = vld [vmem:[#allocation8 + $0x8] sm:$0xff]
          %v434 = vld [vmem:[#allocation8 + $0x10] sm:$0xff]
          %v435 = vld [vmem:[#allocation8 + $0x18] sm:$0xff]
          %v436 = vld [vmem:[#allocation8 + $0x20] sm:$0xff]
          %v437 = vld [vmem:[#allocation8 + $0x28] sm:$0xff]
          %v438 = vld [vmem:[#allocation8 + $0x30] sm:$0xff]
          %v439 = vld [vmem:[#allocation8 + $0x38] sm:$0xff]
          %v440 = vld [vmem:[#allocation8 + $0x40] sm:$0xff]
          %v441 = vld [vmem:[#allocation8 + $0x48] sm:$0xff]
          %v442 = vld [vmem:[#allocation8 + $0x50] sm:$0xff]
          %v443 = vld [vmem:[#allocation8 + $0x58] sm:$0xff]
          %v444 = vld [vmem:[#allocation8 + $0x60] sm:$0xff]
          %v445 = vld [vmem:[#allocation8 + $0x68] sm:$0xff]
          %v446 = vld [vmem:[#allocation8 + $0x70] sm:$0xff]
          %v447 = vld [vmem:[#allocation8 + $0x78] sm:$0xff]
          %v448 = vld [vmem:[%s4] sm:$0x1]
          %v450 = vlaneseq
          %v451 = vshrl.u32 %v450, 7
          %v452 = vsub.s32 0, %v451
          %v453 = vrot.slane %v448, %v452
          %455 = vmatprep.subr.mxu0 0.0
          %456 = vmatpush1.msra.mxu0 %v432
          %457 = vmatprep.subr.mxu0 0.0
          %458 = vmatpush1.msra.mxu0 %v433
          %459 = vmatprep.subr.mxu0 0.0
          %460 = vmatpush1.msra.mxu0 %v434
          %461 = vmatprep.subr.mxu0 0.0
          %462 = vmatpush1.msra.mxu0 %v435
          %463 = vmatprep.subr.mxu0 0.0
          %464 = vmatpush1.msra.mxu0 %v436
          %465 = vmatprep.subr.mxu0 0.0
          %466 = vmatpush1.msra.mxu0 %v437
          %467 = vmatprep.subr.mxu0 0.0
          %468 = vmatpush1.msra.mxu0 %v438
          %469 = vmatprep.subr.mxu0 0.0
          %470 = vmatpush1.msra.mxu0 %v439
          %471 = vmatprep.subr.mxu0 0.0
          %472 = vmatpush1.msra.mxu0 %v440
          %473 = vmatprep.subr.mxu0 0.0
          %474 = vmatpush1.msra.mxu0 %v441
          %475 = vmatprep.subr.mxu0 0.0
          %476 = vmatpush1.msra.mxu0 %v442
          %477 = vmatprep.subr.mxu0 0.0
          %478 = vmatpush1.msra.mxu0 %v443
          %479 = vmatprep.subr.mxu0 0.0
          %480 = vmatpush1.msra.mxu0 %v444
          %481 = vmatprep.subr.mxu0 0.0
          %482 = vmatpush1.msra.mxu0 %v445
          %483 = vmatprep.subr.mxu0 0.0
          %484 = vmatpush1.msra.mxu0 %v446
          %485 = vmatprep.subr.mxu0 0.0
          %486 = vmatpush1.msra.mxu0 %v447
          %487 = vmatprep.subr.mxu0 0.0
          %488 = vmatpush1.msra.mxu0 0.0
          %489 = vmatprep.subr.mxu0 0.0
          %490 = vmatpush1.msra.mxu0 0.0
          %491 = vmatprep.subr.mxu0 0.0
          %492 = vmatpush1.msra.mxu0 0.0
          %493 = vmatprep.subr.mxu0 0.0
          %494 = vmatpush1.msra.mxu0 0.0
          %495 = vmatprep.subr.mxu0 0.0
          %496 = vmatpush1.msra.mxu0 0.0
          %497 = vmatprep.subr.mxu0 0.0
          %498 = vmatpush1.msra.mxu0 0.0
          %499 = vmatprep.subr.mxu0 0.0
          %500 = vmatpush1.msra.mxu0 0.0
          %501 = vmatprep.subr.mxu0 0.0
          %502 = vmatpush1.msra.mxu0 0.0
          %503 = vmatprep.subr.mxu0 0.0
          %504 = vmatpush1.msra.mxu0 0.0
          %505 = vmatprep.subr.mxu0 0.0
          %506 = vmatpush1.msra.mxu0 0.0
          %507 = vmatprep.subr.mxu0 0.0
          %508 = vmatpush1.msra.mxu0 0.0
          %509 = vmatprep.subr.mxu0 0.0
          %510 = vmatpush1.msra.mxu0 0.0
          %511 = vmatprep.subr.mxu0 0.0
          %512 = vmatpush1.msra.mxu0 0.0
          %513 = vmatprep.subr.mxu0 0.0
          %514 = vmatpush1.msra.mxu0 0.0
          %515 = vmatprep.subr.mxu0 0.0
          %516 = vmatpush1.msra.mxu0 0.0
          %517 = vmatprep.subr.mxu0 0.0
          %518 = vmatpush1.msra.mxu0 0.0
          %519 = vmatprep.mubr.f32.mxu0 0.0
          %520 = vmatmul.mubr.f32.gmra.mrb[0].mxu0 %v431
          %v521 = vpop.f32.mrb[0].mxu0
          %v522 = vadd.f32 %v453, %v521
          %v523 = vpop.f32.mrb[0].mxu0
          %524 = vdwg.mxu0
          %525 = vst [vmem:[#allocation9] sm:$0xff] %v522
        $region60: #{tpu_custom_call.1} parent=39 // pred_fallthru
          _
        // Predicated region
        $region61: #{tpu_custom_call.1} parent=39 // pred_check
          %p526 = pneg %p170
        $region62: #{tpu_custom_call.1} parent=39 // pred_check_branch
          %528 = sbr.rel (%p526) target = $region64
        $region63: #{tpu_custom_call.1} parent=39 // pred_region
          %s530 = ssub.s32 128, 128
          %531 = vsyncadd [#allocation5], %s530
          %s532 = smul.addr %s27, 128
          %s533 = scalar_lea.hbm %s5, %s532
          %s535 = sshll.u32 [#allocation9], 4
          %s536 = int_to_ptr.vmem [resolvable:$true] %s535
          %538 = dma.vmem_to_hbm [thread:$0]  %s536, 128, %s533, [#allocation5]
        $region64: #{tpu_custom_call.1} parent=39 // pred_fallthru
          _
        // Predicated region
        $region65: #{tpu_custom_call.1} parent=39 // pred_check
          %p539 = pneg %p170
        $region66: #{tpu_custom_call.1} parent=39 // pred_check_branch
          %541 = sbr.rel (%p539) target = $region68
        $region67: #{tpu_custom_call.1} parent=39 // pred_region
          %542 = dma.done [#allocation5], 128
        $region68: #{tpu_custom_call.1} parent=39 // pred_fallthru
          _
      $region40: #{tpu_custom_call.1} parent=5 // pred_fallthru
        _
      %p543 = scmp.le.s32.totalorder 2, %s18
      // Predicated region
      $region69: #{tpu_custom_call.1} parent=5 // pred_check
        %p544 = pneg %p543
      $region70: #{tpu_custom_call.1} parent=5 // pred_check_branch
        %546 = sbr.rel (%p544) target = $region72
      $region71: #{tpu_custom_call.1} parent=5 // pred_region
        %s547 = ssub.s32 %s18, 2
      $region72: #{tpu_custom_call.1} parent=5 // pred_fallthru
        _
    $region6: #{tpu_custom_call.1} parent=1 // loop_footer
      %s22 = sadd.s32 1, %s18
    $region7: #{tpu_custom_call.1} parent=1 // loop_footer_branch
      %17 = sbr.rel target = $region3
    $region8: #{tpu_custom_call.1} parent=1 // loop_exit
      _
    %548 = vsyncpa [#allocation4], 1
    %s549 = scalar_lea.sflag [#allocation4], 1
    %550 = vsyncpa %s549, 1
    %551 = vsyncpa [#allocation7], 1
    %s552 = scalar_lea.sflag [#allocation7], 1
    %553 = vsyncpa %s552, 1
    %554 = vsyncpa [#allocation5], 1
    %s555 = scalar_lea.sflag [#allocation5], 1
    %556 = vsyncpa %s555, 1

</llo_original>
